<compile_context>
chip_gen: v6e
topology: v6e:2x2x1
jax: 0.10.0
libtpu: 0.0.40
codegen_flags: <defaults>
</compile_context>

<pallas_src>
import functools

import jax
import jax.numpy as jnp
from jax.experimental import pallas as pl
from jax.experimental.pallas import tpu as pltpu


# ----------------------------------------------------------------------------
# Primary (fused) kernel: per-task mean reduction + uncertainty-weighted combine
# ----------------------------------------------------------------------------
def _uwl_fused_kernel(loss_ref, params_ref, out_ref, acc_ref, *, method, inv_count):
    # loss_ref:   (n, tb) f32 VMEM block of per-task per-element losses.
    # params_ref: (n, 2)  f32 VMEM (resident), col 0 = log_sigma, col 1 = coef.
    # out_ref:    (1, 1)  f32 SMEM scalar output.
    # acc_ref:    (n, 1)  f32 VMEM scratch (per-task running sums).
    step = pl.program_id(0)

    @pl.when(step == 0)
    def _():
        acc_ref[...] = jnp.zeros_like(acc_ref)

    # Per-task partial sum of this block (lane reduce on the XLU).  Padding
    # lanes (if any) were zero-filled in the wrapper, so they add nothing.
    acc_ref[...] += jnp.sum(loss_ref[...], axis=-1, keepdims=True)

    @pl.when(step == pl.num_programs(0) - 1)
    def _():
        means = acc_ref[...] * inv_count                   # (n, 1) per-task means
        log_sigmas = params_ref[:, 0:1]                    # (n, 1)
        task_coefs = params_ref[:, 1:2]                    # (n, 1)
        # coefs = task_coefs / exp(2*ls), reformulated without the divide.
        coefs = task_coefs * jnp.exp(-2.0 * log_sigmas)
        if method == "v1":
            reg = log_sigmas                               # no vars needed at all
        else:  # "v2"
            reg = jnp.log(1.0 + jnp.exp(2.0 * log_sigmas))  # matches torch.log(1+vars)
        out_ref[0, 0] = jnp.sum(reg + coefs * means)


def uncertainty_weighted_loss_fused(loss_elems, log_sigmas, task_coefs,
                                    *, method="v2", block_elems=512):
    """Fused per-task mean reduction + uncertainty-weighted combine.

    loss_elems: (n_tasks, E) f32 per-element loss values (e.g. (pred-targ)^2
                flattened); each task's scalar loss is its mean over E.
    Returns the combined scalar loss.
    """
    assert method in ("v1", "v2")
    assert block_elems % 128 == 0
    # TODO(synk): fused path assumes equal per-task element counts; ragged
    # per-task shapes fall back to `uncertainty_weighted_loss` below.
    loss_elems = jnp.asarray(loss_elems, jnp.float32)
    n, e = loss_elems.shape

    tb = block_elems
    e_pad = pl.cdiv(e, tb) * tb
    if e_pad != e:
        loss_elems = jnp.pad(loss_elems, ((0, 0), (0, e_pad - e)))

    params = jnp.stack(
        [jnp.asarray(log_sigmas, jnp.float32).reshape(n),
         jnp.asarray(task_coefs, jnp.float32).reshape(n)],
        axis=-1,
    )  # (n, 2)

    out = pl.pallas_call(
        functools.partial(_uwl_fused_kernel, method=method,
                          inv_count=float(1.0 / e)),
        out_shape=jax.ShapeDtypeStruct((1, 1), jnp.float32),
        grid=(e_pad // tb,),
        in_specs=[
            pl.BlockSpec((n, tb), lambda i: (0, i)),       # pipelined loss blocks
            pl.BlockSpec(memory_space=pltpu.VMEM),          # params resident in VMEM
        ],
        out_specs=pl.BlockSpec(memory_space=pltpu.SMEM),     # scalar -> SMEM
        scratch_shapes=[pltpu.VMEM((n, 1), jnp.float32)],
        compiler_params=pltpu.CompilerParams(
            dimension_semantics=("arbitrary",)),              # reduction axis
    )(loss_elems, params)
    return out[0, 0]


# ----------------------------------------------------------------------------
# Fallback kernel: exact module interface (pre-reduced scalar losses)
# ----------------------------------------------------------------------------
def _uwl_combine_kernel(packed_ref, out_ref, *, method):
    # packed_ref: (3, n) f32 VMEM; rows = [losses, log_sigmas, task_coefs].
    # out_ref:    (1, 1) f32 SMEM scalar output.
    losses = packed_ref[0:1, :]
    log_sigmas = packed_ref[1:2, :]
    task_coefs = packed_ref[2:3, :]
    coefs = task_coefs * jnp.exp(-2.0 * log_sigmas)
    if method == "v1":
        reg = log_sigmas
    else:  # "v2"
        reg = jnp.log(1.0 + jnp.exp(2.0 * log_sigmas))
    out_ref[0, 0] = jnp.sum(reg + coefs * losses)


def uncertainty_weighted_loss(losses, log_sigmas, task_coefs, *, method="v2"):
    """Combine pre-reduced scalar task losses (the original module interface).

    `losses` should be a pre-stacked (n,) array of scalar (mean-reduced) task
    losses.  All three vectors are packed into one (3, n) array -> 1 DMA.
    """
    assert method in ("v1", "v2")
    losses = jnp.asarray(losses, jnp.float32).reshape(-1)
    n = losses.shape[0]
    packed = jnp.stack(
        [losses,
         jnp.asarray(log_sigmas, jnp.float32).reshape(n),
         jnp.asarray(task_coefs, jnp.float32).reshape(n)],
        axis=0,
    )  # (3, n)

    out = pl.pallas_call(
        functools.partial(_uwl_combine_kernel, method=method),
        out_shape=jax.ShapeDtypeStruct((1, 1), jnp.float32),
        in_specs=[pl.BlockSpec(memory_space=pltpu.VMEM)],     # single whole-array tile
        out_specs=pl.BlockSpec(memory_space=pltpu.SMEM),      # scalar -> SMEM
    )(packed)
    return out[0, 0]


if __name__ == "__main__":
    # Module config: n tasks, per-task coef (1.0 cls / 0.5 reg), learnable
    # log_sigmas (fixed example values here), methods v1 and v2.
    n = 3
    log_sigmas = jnp.asarray([0.1, -0.2, 0.3], dtype=jnp.float32)
    task_coefs = jnp.asarray([1.0, 1.0, 0.5], dtype=jnp.float32)

    key = jax.random.PRNGKey(0)
    keys = jax.random.split(key, 2 * n)

    # Per-task per-element squared-error losses (reduction=mean style):
    # batch=2, channels=4, spatial=16x16 -> E = 2048 elements per task.
    shape = (2, 4, 16, 16)
    elems = []
    for t in range(n):
        pred = jax.random.normal(keys[2 * t], shape, dtype=jnp.float32)
        targ = jax.random.normal(keys[2 * t + 1], shape, dtype=jnp.float32)
        elems.append(((pred - targ) ** 2).reshape(-1))
    loss_elems = jnp.stack(elems, axis=0)  # (n, E)

    # Primary fused path: per-task mean + combine in one kernel.
    fused_v2 = uncertainty_weighted_loss_fused(loss_elems, log_sigmas, task_coefs,
                                               method="v2")
    fused_v1 = uncertainty_weighted_loss_fused(loss_elems, log_sigmas, task_coefs,
                                               method="v1")

    # Fallback path: pre-reduced scalar losses (exact module interface).
    losses_vec = jnp.mean(loss_elems, axis=-1)  # (n,)
    comb_v2 = uncertainty_weighted_loss(losses_vec, log_sigmas, task_coefs,
                                        method="v2")
    comb_v1 = uncertainty_weighted_loss(losses_vec, log_sigmas, task_coefs,
                                        method="v1")

    jax.block_until_ready((fused_v1, fused_v2, comb_v1, comb_v2))

    # Pure-JAX reference (same math as the PyTorch module).
    vars_ref = jnp.exp(2.0 * log_sigmas)
    coefs_ref = task_coefs / vars_ref
    ref_v2 = jnp.sum(jnp.log(1.0 + vars_ref)) + jnp.sum(coefs_ref * losses_vec)
    ref_v1 = jnp.sum(log_sigmas) + jnp.sum(coefs_ref * losses_vec)

    assert jnp.allclose(fused_v2, ref_v2, rtol=1e-5, atol=1e-5), (fused_v2, ref_v2)
    assert jnp.allclose(fused_v1, ref_v1, rtol=1e-5, atol=1e-5), (fused_v1, ref_v1)
    assert jnp.allclose(comb_v2, ref_v2, rtol=1e-5, atol=1e-5), (comb_v2, ref_v2)
    assert jnp.allclose(comb_v1, ref_v1, rtol=1e-5, atol=1e-5), (comb_v1, ref_v1)

    print("KERNEL_OK")
</pallas_src>

<mosaic_0001>
module attributes {stable_mosaic.version = 11 : i64} {
  func.func @_uwl_fused_kernel(%arg0: i32, %arg1: memref<3x512xf32, #tpu.memory_space<vmem>>, %arg2: memref<3x2xf32, #tpu.memory_space<vmem>>, %arg3: memref<1x1xf32, #tpu.memory_space<smem>>, %arg4: memref<3x1xf32, #tpu.memory_space<vmem>>) attributes {dimension_semantics = [#tpu.dimension_semantics<arbitrary>], iteration_bounds = array<i64: 4>, scalar_prefetch = 0 : i64, scratch_operands = 1 : i64, tpu.core_type = #tpu.core_type<tc>, window_params = [{transform_indices = @transform_0, window_bounds = array<i64: 3, 512>}, {pipeline_mode = #tpu.pipeline_mode<synchronous>, transform_indices = @transform_1, window_bounds = array<i64: 3, 2>}, {transform_indices = @transform_2, window_bounds = array<i64: 1, 1>}]} {
    %c0_i32 = arith.constant 0 : i32
    %0 = arith.cmpi eq, %arg0, %c0_i32 : i32
    %1 = arith.extui %0 : i1 to i32
    %c0_i32_0 = arith.constant 0 : i32
    %2 = arith.cmpi ne, %1, %c0_i32_0 : i32
    scf.if %2 {
      %cst_7 = arith.constant 0.000000e+00 : f32
      %12 = vector.broadcast %cst_7 : f32 to vector<3x1xf32>
      %c0_8 = arith.constant 0 : index
      %c0_9 = arith.constant 0 : index
      %13 = vector.load %arg4[%c0_8, %c0_9] : memref<3x1xf32, #tpu.memory_space<vmem>>, vector<3x1xf32>
      tpu.vector_store %arg4[%c0_8, %c0_9], %12 {strides = array<i32>} : memref<3x1xf32, #tpu.memory_space<vmem>>, vector<3x1xf32>,
    } else {
    }
    %c0 = arith.constant 0 : index
    %c0_1 = arith.constant 0 : index
    %3 = vector.load %arg4[%c0, %c0_1] : memref<3x1xf32, #tpu.memory_space<vmem>>, vector<3x1xf32>
    %c0_2 = arith.constant 0 : index
    %c0_3 = arith.constant 0 : index
    %4 = vector.load %arg1[%c0_2, %c0_3] : memref<3x512xf32, #tpu.memory_space<vmem>>, vector<3x512xf32>
    %cst = arith.constant dense<0.000000e+00> : vector<3xf32>
    %5 = vector.multi_reduction <add>, %4, %cst [1] : vector<3x512xf32> to vector<3xf32>
    %6 = vector.shape_cast %5 : vector<3xf32> to vector<3x1xf32>
    %7 = arith.addf %3, %6 : vector<3x1xf32>
    %c0_4 = arith.constant 0 : index
    %c0_5 = arith.constant 0 : index
    %8 = vector.load %arg4[%c0_4, %c0_5] : memref<3x1xf32, #tpu.memory_space<vmem>>, vector<3x1xf32>
    tpu.vector_store %arg4[%c0_4, %c0_5], %7 {strides = array<i32>} : memref<3x1xf32, #tpu.memory_space<vmem>>, vector<3x1xf32>,
    %c3_i32 = arith.constant 3 : i32
    %9 = arith.cmpi eq, %arg0, %c3_i32 : i32
    %10 = arith.extui %9 : i1 to i32
    %c0_i32_6 = arith.constant 0 : i32
    %11 = arith.cmpi ne, %10, %c0_i32_6 : i32
    scf.if %11 {
      %c0_7 = arith.constant 0 : index
      %c0_8 = arith.constant 0 : index
      %12 = vector.load %arg4[%c0_7, %c0_8] : memref<3x1xf32, #tpu.memory_space<vmem>>, vector<3x1xf32>
      %cst_9 = arith.constant 4.8828125E-4 : f32
      %13 = vector.broadcast %cst_9 : f32 to vector<3x1xf32>
      %14 = arith.mulf %12, %13 : vector<3x1xf32>
      %c0_10 = arith.constant 0 : index
      %c0_11 = arith.constant 0 : index
      %15 = vector.load %arg2[%c0_10, %c0_11] : memref<3x2xf32, #tpu.memory_space<vmem>>, vector<3x1xf32>
      %c0_12 = arith.constant 0 : index
      %c1 = arith.constant 1 : index
      %16 = vector.load %arg2[%c0_12, %c1] : memref<3x2xf32, #tpu.memory_space<vmem>>, vector<3x1xf32>
      %cst_13 = arith.constant -2.000000e+00 : f32
      %17 = vector.broadcast %cst_13 : f32 to vector<3x1xf32>
      %18 = arith.mulf %17, %15 : vector<3x1xf32>
      %19 = math.exp %18 : vector<3x1xf32>
      %20 = arith.mulf %16, %19 : vector<3x1xf32>
      %cst_14 = arith.constant 2.000000e+00 : f32
      %21 = vector.broadcast %cst_14 : f32 to vector<3x1xf32>
      %22 = arith.mulf %21, %15 : vector<3x1xf32>
      %23 = math.exp %22 : vector<3x1xf32>
      %cst_15 = arith.constant 1.000000e+00 : f32
      %24 = vector.broadcast %cst_15 : f32 to vector<3x1xf32>
      %25 = arith.addf %24, %23 : vector<3x1xf32>
      %26 = math.log %25 : vector<3x1xf32>
      %27 = arith.mulf %20, %14 : vector<3x1xf32>
      %28 = arith.addf %26, %27 : vector<3x1xf32>
      %29 = vector.shape_cast %28 : vector<3x1xf32> to vector<1x3x1xf32>
      %cst_16 = arith.constant dense<0.000000e+00> : vector<1xf32>
      %30 = vector.multi_reduction <add>, %29, %cst_16 [1, 2] : vector<1x3x1xf32> to vector<1xf32>
      %31 = vector.shape_cast %30 : vector<1xf32> to vector<1x1x1xf32>
      %32 = vector.extract %31[0, 0, 0] : f32 from vector<1x1x1xf32>
      %c0_17 = arith.constant 0 : index
      %c0_18 = arith.constant 0 : index
      %33 = memref.load %arg3[%c0_17, %c0_18] : memref<1x1xf32, #tpu.memory_space<smem>>
      memref.store %32, %arg3[%c0_17, %c0_18] : memref<1x1xf32, #tpu.memory_space<smem>>
    } else {
    }
    return
  }
  func.func @transform_0(%arg0: i32) -> (i32, i32) {
    %c0_i32 = arith.constant 0 : i32
    %c0_i32_0 = arith.constant 0 : i32
    return %c0_i32, %arg0 : i32, i32
  }
  func.func @transform_1(%arg0: i32) -> (i32, i32) {
    %c0_i32 = arith.constant 0 : i32
    %c0_i32_0 = arith.constant 0 : i32
    %c0_i32_1 = arith.constant 0 : i32
    return %c0_i32, %c0_i32_0 : i32, i32
  }
  func.func @transform_2(%arg0: i32) -> (i32, i32) {
    %c0_i32 = arith.constant 0 : i32
    %c0_i32_0 = arith.constant 0 : i32
    %c0_i32_1 = arith.constant 0 : i32
    return %c0_i32, %c0_i32_0 : i32, i32
  }
}

</mosaic_0001>

<llo_original>
// kernel: tpu_custom_call.1
$region0: #{tpu_custom_call.1}
  #allocation0 [shape = 'u32[]', space=smem, size = 0x4, offset = 0x4, fixed_abs, tag = 'smem constant byte address 0x4 - core index']
  #allocation1 [shape = 'u32[144,128]{1,0:T(1,128)}', space=vmem, size = 0x12000, scoped, tag = 'internal scratch']
  #allocation2 [shape = 'f32[3,1]{1,0:T(4,128)}', space=vmem, size = 0x800, scoped, tag = 'scratch operand']
  %s0 = inlined_call_operand.hbm [shape: f32[3,2048], index: 0, kind: input, shape index: {}]
  %s1 = inlined_call_operand.vmem [shape: f32[3,2], index: 1, kind: input, shape index: {}]
  %s2 = inlined_call_operand.hbm [shape: f32[1,1], index: 2, kind: output, shape index: {}]
  %s3 = sld [smem:[#allocation0]]
  $region53: #{tpu_custom_call.1} parent=0
    _
  %s5 = ssub.s32 1, %s3
  %s6 = scalar_select 0, %s5, %s3
  $region1: #{tpu_custom_call.1} parent=0
    #allocation3 [shape = 'u8[16384]{0}', space=vmem, size = 0x4000, scoped, tag = 'input window, operand 0']
    #allocation4 [shape = 's32[2]{0}', space=sflag, size = 0x8, scoped, tag = 'scoped memory for tpu_custom_call.1']
    #allocation5 [shape = 's32[2]{0}', space=sflag, size = 0x8, scoped, tag = 'scoped memory for tpu_custom_call.1']
    #allocation6 [shape = 'u8[512]{0}', space=smem, size = 0x200, scoped, tag = 'output window, operand 0, single buffered']
    %7 = vsyncpa [#allocation4], 0
    %s8 = scalar_lea.sflag [#allocation4], 1
    %9 = vsyncpa %s8, 0
    %10 = vsyncpa [#allocation5], 0
    loop: start=0, step=1, limit=6
    $region2: #{tpu_custom_call.1} parent=1 // loop_pre_header
      _
    $region3: #{tpu_custom_call.1} parent=1 // loop_header
      %s12 = sphi 0, %s16
      %p13 = scmp.ge.s32.totalorder %s12, 6
      %s22 = sphi 0, %s24
      %s25 = sphi 0, %s22
      %s26 = sphi 0, %s25
      %s42 = sphi 0, %s26
      %s46 = sphi 0, %s46
      %s48 = sphi 0, %s46
      %s49 = sphi 0, %s48
      %s63 = sphi 0, %s49
      %s67 = sphi 0, %s67
      %s69 = sphi 0, %s67
      %s70 = sphi 0, %s69
      %s84 = sphi 0, %s70
    $region4: #{tpu_custom_call.1} parent=1 // loop_header_branch
      %15 = sbr.rel (%p13) target = $region8
    $region5: #{tpu_custom_call.1} parent=1 // loop_body
      %s17 = ssub.s32 %s12, 1
      %s18 = ssub.s32 %s12, 2
      %s19 = sadd.s32 %s12, 1
      %s20 = ssub.s32 %s12, %s19
      %p21 = scmp.eq.s32.totalorder %s20, 0
      %s23 = sadd.s32 %s22, 1
      %s24 = scalar_select %p21, %s22, %s23
      %p27 = pneg %p21
      %p28 = scmp.eq.s32.totalorder %s12, 3
      %p29 = por %p27, %p28
      %p30 = scmp.ne.s32.totalorder %s22, %s25
      %p31 = scmp.eq.s32.totalorder %s12, 0
      %p32 = por %p30, %p31
      %p33 = scmp.ne.s32.totalorder %s22, %s25
      %p34 = scmp.eq.s32.totalorder %s17, 3
      %p35 = por %p33, %p34
      %p36 = scmp.ne.s32.totalorder %s25, %s26
      %p37 = scmp.eq.s32.totalorder %s17, 0
      %p38 = por %p36, %p37
      %p39 = scmp.ne.s32.totalorder %s25, %s26
      %p40 = scmp.eq.s32.totalorder %s18, 3
      %p41 = por %p39, %p40
      %p43 = scmp.ne.s32.totalorder %s26, %s42
      %p44 = scmp.eq.s32.totalorder %s18, 0
      %p45 = por %p43, %p44
      %s47 = sadd.s32 %s46, 1
      %p50 = scmp.eq.s32.totalorder %s12, 3
      %p51 = scmp.ne.s32.totalorder %s46, %s48
      %p52 = scmp.eq.s32.totalorder %s12, 0
      %p53 = por %p51, %p52
      %p54 = scmp.ne.s32.totalorder %s46, %s48
      %p55 = scmp.eq.s32.totalorder %s17, 3
      %p56 = por %p54, %p55
      %p57 = scmp.ne.s32.totalorder %s48, %s49
      %p58 = scmp.eq.s32.totalorder %s17, 0
      %p59 = por %p57, %p58
      %p60 = scmp.ne.s32.totalorder %s48, %s49
      %p61 = scmp.eq.s32.totalorder %s18, 3
      %p62 = por %p60, %p61
      %p64 = scmp.ne.s32.totalorder %s49, %s63
      %p65 = scmp.eq.s32.totalorder %s18, 0
      %p66 = por %p64, %p65
      %s68 = sadd.s32 %s67, 1
      %p71 = scmp.eq.s32.totalorder %s12, 3
      %p72 = scmp.ne.s32.totalorder %s67, %s69
      %p73 = scmp.eq.s32.totalorder %s12, 0
      %p74 = por %p72, %p73
      %p75 = scmp.ne.s32.totalorder %s67, %s69
      %p76 = scmp.eq.s32.totalorder %s17, 3
      %p77 = por %p75, %p76
      %p78 = scmp.ne.s32.totalorder %s69, %s70
      %p79 = scmp.eq.s32.totalorder %s17, 0
      %p80 = por %p78, %p79
      %p81 = scmp.ne.s32.totalorder %s69, %s70
      %p82 = scmp.eq.s32.totalorder %s18, 3
      %p83 = por %p81, %p82
      %p85 = scmp.ne.s32.totalorder %s70, %s84
      %p86 = scmp.eq.s32.totalorder %s18, 0
      %p87 = por %p85, %p86
      %p88 = scmp.le.s32.totalorder 1, %s12
      %p89 = scmp.lt.s32.totalorder %s12, 5
      %p90 = pnand %p88, %p89
      %p91 = pneg %p90
      // Predicated region
      $region9: #{tpu_custom_call.1} parent=5 // pred_check
        _
      $region10: #{tpu_custom_call.1} parent=5 // pred_check_branch
        %93 = sbr.rel (%p90) target = $region12
      $region11: #{tpu_custom_call.1} parent=5 // pred_region
        %s94 = ssub.s32 %s12, 1
        // Predicated region
        $region13: #{tpu_custom_call.1} parent=11 // pred_check
          %p95 = pneg %p59
        $region14: #{tpu_custom_call.1} parent=11 // pred_check_branch
          %97 = sbr.rel (%p95) target = $region16
        $region15: #{tpu_custom_call.1} parent=11 // pred_region
          _
        $region16: #{tpu_custom_call.1} parent=11 // pred_fallthru
          _
      $region12: #{tpu_custom_call.1} parent=5 // pred_fallthru
        _
      %p98 = scmp.lt.s32.totalorder %s12, 4
      // Predicated region
      $region17: #{tpu_custom_call.1} parent=5 // pred_check
        %p99 = pneg %p98
      $region18: #{tpu_custom_call.1} parent=5 // pred_check_branch
        %101 = sbr.rel (%p99) target = $region20
      $region19: #{tpu_custom_call.1} parent=5 // pred_region
        // Predicated region
        $region21: #{tpu_custom_call.1} parent=19 // pred_check
          %p102 = pneg %p32
        $region22: #{tpu_custom_call.1} parent=19 // pred_check_branch
          %104 = sbr.rel (%p102) target = $region24
        $region23: #{tpu_custom_call.1} parent=19 // pred_region
          %s105 = sand.u32 %s22, 1
          %s106 = scalar_lea.sflag [#allocation4], %s105
          %s107 = sand.u32 %s22, 1
          %s108 = smul.addr %s107, 16
          %s109 = scalar_lea.vmem [#allocation3], %s108
          %s110 = smul.u32 4, %s12
          %s112 = ssub.s32 256, 256
          %113 = vsyncadd %s106, %s112
          %s114 = smul.addr %s110, 64
          %s115 = scalar_lea.hbm %s0, %s114
          %s117 = sshll.u32 %s109, 4
          %s118 = int_to_ptr.vmem [resolvable:$true] %s117
          %120 = dma.hbm_to_vmem [thread:$0]  %s115, 256, %s118, %s106
        $region24: #{tpu_custom_call.1} parent=19 // pred_fallthru
          _
      $region20: #{tpu_custom_call.1} parent=5 // pred_fallthru
        _
      %p121 = scmp.le.s32.totalorder 1, %s12
      %p122 = scmp.lt.s32.totalorder %s12, 5
      %p123 = pnand %p121, %p122
      %p124 = pneg %p123
      // Predicated region
      $region25: #{tpu_custom_call.1} parent=5 // pred_check
        _
      $region26: #{tpu_custom_call.1} parent=5 // pred_check_branch
        %126 = sbr.rel (%p123) target = $region28
      $region27: #{tpu_custom_call.1} parent=5 // pred_region
        %s127 = ssub.s32 %s12, 1
        %s128 = sand.u32 %s25, 1
        %s129 = scalar_lea.sflag [#allocation4], %s128
        %s130 = sand.u32 %s25, 1
        %s131 = smul.addr %s130, 16
        %s132 = scalar_lea.vmem [#allocation3], %s131
        // Predicated region
        $region29: #{tpu_custom_call.1} parent=27 // pred_check
          %p133 = pneg %p38
        $region30: #{tpu_custom_call.1} parent=27 // pred_check_branch
          %135 = sbr.rel (%p133) target = $region32
        $region31: #{tpu_custom_call.1} parent=27 // pred_region
          %136 = dma.done %s129, 256
        $region32: #{tpu_custom_call.1} parent=27 // pred_fallthru
          _
        %s137 = sand.u32 %s25, 1
        %s138 = scalar_lea.sflag [#allocation4], %s137
        %s139 = sand.u32 %s25, 1
        %s140 = smul.addr %s139, 16
        %s141 = scalar_lea.vmem [#allocation3], %s140
        %p142 = pneg %p38
        %p143 = pneg %p35
        %p144 = pneg %p59
        %p145 = pneg %p56
        %p146 = pneg %p80
        %p147 = pneg %p77
        %s148 = smul.u32 4, %s17
        %p149 = scmp.eq.s32.totalorder %s17, 0
        // Predicated region
        $region33: #{tpu_custom_call.1} parent=27 // pred_check
          %p150 = pneg %p149
        $region34: #{tpu_custom_call.1} parent=27 // pred_check_branch
          %152 = sbr.rel (%p150) target = $region36
        $region35: #{tpu_custom_call.1} parent=27 // pred_region
          %vm153 = vcmask 2048
          %154 = vst.msk [vmem:[#allocation2] sm:$0x7] %vm153, 0.0
        $region36: #{tpu_custom_call.1} parent=27 // pred_fallthru
          _
        %v155 = vld [vmem:[#allocation2] sm:$0x7]
        %v156 = vld [vmem:[%s132] sm:$0x77]
        %v157 = vld [vmem:[%s132 + $0x8] sm:$0x77]
        %v160 = vcombine.high %v156, %v156
        %v161 = vcombine.high %v157, %v157
        %vm164 = vcmask 1042432
        %v165 = vsel %vm164, %v156, 0.0
        %v166 = vsel %vm164, %v160, 0.0
        %v167 = vadd.f32 %v165, %v166
        %v168 = vsel %vm164, %v157, 0.0
        %v169 = vadd.f32 %v167, %v168
        %v170 = vsel %vm164, %v161, 0.0
        %v171 = vadd.f32 %v169, %v170
        %172 = vadd.xlane.f32.xlu0 %v171
        %v173 = vpop.xlane.xlu0 %172
        %v174 = vadd.f32 %v155, %v173
        %vm175 = vcmask 2048
        %176 = vst.msk [vmem:[#allocation2] sm:$0x7] %vm175, %v174
        %p177 = scmp.eq.s32.totalorder %s17, 3
        // Predicated region
        $region37: #{tpu_custom_call.1} parent=27 // pred_check
          %p178 = pneg %p177
        $region38: #{tpu_custom_call.1} parent=27 // pred_check_branch
          %180 = sbr.rel (%p178) target = $region40
        $region39: #{tpu_custom_call.1} parent=27 // pred_region
          %v181 = vld [vmem:[#allocation2] sm:$0x7]
          %v182 = vmul.f32 %v181, 0.00048828125
          %v183 = vld [vmem:[%s1] sm:$0x7]
          %v184 = vmul.f32 %v183, -2.0
          %v185 = vmul.f32 %v184, 1.442695
          %v186 = vpow.pop %v185
          %188 = vrot.lane.b32.xlu0 %v186, 1
          %v189 = vpop.permute.xlu0 %188
          %v191 = vmul.f32 %v183, %v189
          %v192 = vmul.f32 %v183, 2.0
          %v193 = vmul.f32 %v192, 1.442695
          %v194 = vpow.pop %v193
          %v195 = vadd.f32 %v194, 1.0
          %v196 = vlog2.pop %v195
          %v197 = vmul.f32 %v196, 0.6931472
          %199 = vrot.lane.b32.xlu0 %v182, 1
          %v200 = vpop.permute.xlu0 %199
          %v202 = vmul.f32 %v191, %v200
          %204 = vrot.lane.b32.xlu0 %v202, 127
          %v205 = vpop.permute.xlu0 %204
          %v207 = vadd.f32 %v197, %v205
          %v208 = vsel %vm175, %v207, 0.0
          %209 = vadd.xlane.f32.xlu0 %v208
          %v210 = vpop.xlane.xlu0 %209
          %v211 = vrot.slane %v210, 4
          %v212 = vadd.f32 %v210, %v211
          %v213 = vrot.slane %v212, 2
          %v214 = vadd.f32 %v212, %v213
          %v215 = vrot.slane %v214, 1
          %v216 = vadd.f32 %v214, %v215
          %s217 = vtos %v216
          %s218 = scalar_lea.smem [#allocation6], 0
          %219 = sst [smem:[%s218]] %s217
        $region40: #{tpu_custom_call.1} parent=27 // pred_fallthru
          _
        // Predicated region
        $region41: #{tpu_custom_call.1} parent=27 // pred_check
          %p220 = pneg %p77
        $region42: #{tpu_custom_call.1} parent=27 // pred_check_branch
          %222 = sbr.rel (%p220) target = $region44
        $region43: #{tpu_custom_call.1} parent=27 // pred_region
          %s224 = ssub.s32 16, 16
          %225 = vsyncadd [#allocation5], %s224
          %228 = dma.smem_to_hbm [#allocation6], 16, %s2, [#allocation5]
        $region44: #{tpu_custom_call.1} parent=27 // pred_fallthru
          _
        // Predicated region
        $region45: #{tpu_custom_call.1} parent=27 // pred_check
          %p229 = pneg %p77
        $region46: #{tpu_custom_call.1} parent=27 // pred_check_branch
          %231 = sbr.rel (%p229) target = $region48
        $region47: #{tpu_custom_call.1} parent=27 // pred_region
          %232 = dma.done [#allocation5], 16
        $region48: #{tpu_custom_call.1} parent=27 // pred_fallthru
          _
        %233 = sfence
      $region28: #{tpu_custom_call.1} parent=5 // pred_fallthru
        _
      %p234 = scmp.le.s32.totalorder 2, %s12
      // Predicated region
      $region49: #{tpu_custom_call.1} parent=5 // pred_check
        %p235 = pneg %p234
      $region50: #{tpu_custom_call.1} parent=5 // pred_check_branch
        %237 = sbr.rel (%p235) target = $region52
      $region51: #{tpu_custom_call.1} parent=5 // pred_region
        %s238 = ssub.s32 %s12, 2
      $region52: #{tpu_custom_call.1} parent=5 // pred_fallthru
        _
    $region6: #{tpu_custom_call.1} parent=1 // loop_footer
      %s16 = sadd.s32 1, %s12
    $region7: #{tpu_custom_call.1} parent=1 // loop_footer_branch
      %11 = sbr.rel target = $region3
    $region8: #{tpu_custom_call.1} parent=1 // loop_exit
      _
    %239 = vsyncpa [#allocation4], 1
    %s240 = scalar_lea.sflag [#allocation4], 1
    %241 = vsyncpa %s240, 1
    %242 = vsyncpa [#allocation5], 1
    %s243 = scalar_lea.sflag [#allocation5], 1
    %244 = vsyncpa %s243, 1

</llo_original>
